<compile_context>
chip_gen: v5e
topology: v5e:2x2
jax: 0.10.0
libtpu: 0.0.40
codegen_flags: <defaults>
</compile_context>

<pallas_src>
import functools

import jax
import jax.numpy as jnp
from jax.experimental import pallas as pl
from jax.experimental.pallas import tpu as pltpu


# ----------------------------------------------------------------------------
# Small helpers
# ----------------------------------------------------------------------------
def _round_up(v, m):
    return ((v + m - 1) // m) * m


def _pad2(a, shape):
    return jnp.pad(a, [(0, s - d) for d, s in zip(a.shape, shape)])


def _pick_tile(dim, pref):
    """Largest of (pref, 512, 256, 128) that divides `dim` (dim is a 128-multiple)."""
    for t in (pref, 512, 256, 128):
        if t <= dim and dim % t == 0:
            return t
    return dim


# ----------------------------------------------------------------------------
# Pallas kernel 1: tiled matmul with optional fused bias + ReLU epilogue
#   grid = (M/tm, N/tn, K/tk);  acc in VMEM;  init at k==0, epilogue at k==last
# ----------------------------------------------------------------------------
def _matmul_kernel(a_ref, b_ref, bias_ref, o_ref, acc_ref, *, add_bias, apply_relu):
    @pl.when(pl.program_id(2) == 0)
    def _():
        acc_ref[...] = jnp.zeros_like(acc_ref)

    acc_ref[...] += jnp.dot(a_ref[...], b_ref[...], preferred_element_type=jnp.float32)

    @pl.when(pl.program_id(2) == pl.num_programs(2) - 1)
    def _():
        out = acc_ref[...]
        if add_bias:
            out = out + bias_ref[...]
        if apply_relu:
            out = jnp.maximum(out, 0.0)
        o_ref[...] = out.astype(o_ref.dtype)


def matmul_bias_act(a, b, bias=None, apply_relu=False, compute_dtype=jnp.float32):
    """out = [relu]( a @ b [+ bias] ); a:(M,K), b:(K,N), bias:(1,N). All dims 128-multiples.

    compute_dtype=jnp.bfloat16 halves HBM/VMEM traffic and doubles MXU rate on
    v6e/v7x (accumulation stays f32); default f32 for exact parity.
    """
    M, K = a.shape
    K2, N = b.shape
    assert K == K2
    tm = _pick_tile(M, 256)
    tn = _pick_tile(N, 256)
    tk = _pick_tile(K, 512)

    add_bias = bias is not None
    if bias is None:
        bias = jnp.zeros((1, N), jnp.float32)
    a = a.astype(compute_dtype)
    b = b.astype(compute_dtype)
    bias = bias.astype(jnp.float32)

    kernel = functools.partial(_matmul_kernel, add_bias=add_bias, apply_relu=apply_relu)
    return pl.pallas_call(
        kernel,
        out_shape=jax.ShapeDtypeStruct((M, N), jnp.float32),
        grid_spec=pltpu.PrefetchScalarGridSpec(
            num_scalar_prefetch=0,
            grid=(M // tm, N // tn, K // tk),
            in_specs=[
                pl.BlockSpec((tm, tk), lambda i, j, k: (i, k)),
                pl.BlockSpec((tk, tn), lambda i, j, k: (k, j)),
                pl.BlockSpec((1, tn), lambda i, j, k: (0, j)),
            ],
            out_specs=pl.BlockSpec((tm, tn), lambda i, j, k: (i, j)),
            scratch_shapes=[pltpu.VMEM((tm, tn), jnp.float32)],
        ),
        compiler_params=pltpu.CompilerParams(
            dimension_semantics=("parallel", "parallel", "arbitrary"),
        ),
    )(a, b, bias)


def gcn_layer(x_p, w_p, b_p, a_p, apply_relu, compute_dtype=jnp.float32):
    """Padded GCN layer: [relu]( A_hat @ (X @ W) + b ), two tiled Pallas matmuls."""
    xw = matmul_bias_act(x_p, w_p, compute_dtype=compute_dtype)
    return matmul_bias_act(a_p, xw, bias=b_p, apply_relu=apply_relu,
                           compute_dtype=compute_dtype)


# ----------------------------------------------------------------------------
# Pallas kernel 2: lane-dense score head
#   dist_t : (D, E) transposed edge differences (zero-padded)
#   w_row  : (1, D) pre-transposed Linear(D,1) weight
#   outputs: o = relu(w @ dist_t + b)  as a lane-dense (1, E) row,
#            loss = mean over the REAL edges of (dist @ w) (cross-tile accumulator)
# ----------------------------------------------------------------------------
def _score_kernel(w_ref, d_ref, b_ref, o_ref, loss_ref, *, inv_e):
    j = pl.program_id(0)
    s = jnp.dot(w_ref[...], d_ref[...], preferred_element_type=jnp.float32)  # (1, te)
    o_ref[...] = jnp.maximum(s + b_ref[...], 0.0)

    @pl.when(j == 0)
    def _():
        loss_ref[...] = jnp.zeros_like(loss_ref)

    # padded edge columns are all-zero so they contribute 0 to the sum
    loss_ref[...] += jnp.sum(s, axis=1, keepdims=True) * inv_e


def score_layer(dist_t, w_row, b, num_edges):
    D, E = dist_t.shape
    te = _pick_tile(E, 512)
    kernel = functools.partial(_score_kernel, inv_e=1.0 / float(num_edges))
    o, loss = pl.pallas_call(
        kernel,
        out_shape=(
            jax.ShapeDtypeStruct((1, E), jnp.float32),
            jax.ShapeDtypeStruct((1, 1), jnp.float32),
        ),
        grid_spec=pltpu.PrefetchScalarGridSpec(
            num_scalar_prefetch=0,
            grid=(E // te,),
            in_specs=[
                pl.BlockSpec((1, D), lambda j: (0, 0)),
                pl.BlockSpec((D, te), lambda j: (0, j)),
                pl.BlockSpec((1, 1), lambda j: (0, 0)),
            ],
            out_specs=(
                pl.BlockSpec((1, te), lambda j: (0, j)),
                pl.BlockSpec((1, 1), lambda j: (0, 0)),   # resident accumulator
            ),
        ),
        compiler_params=pltpu.CompilerParams(
            dimension_semantics=("arbitrary",),
        ),
    )(w_row, dist_t, b)
    return o, loss


# ----------------------------------------------------------------------------
# Glue (plain JAX): normalized adjacency, edge-mean loss, parameter setup
# ----------------------------------------------------------------------------
def gcn_norm_adj(edge_index, num_nodes):
    """Dense  D^{-1/2} (A + I) D^{-1/2}  as used by PyG's GCNConv.

    Input-invariant across training steps -> hoist it out of the per-step path.
    # TODO(synk): replace the dense A_hat with a sparse scatter/segment-sum
    # aggregation kernel (edge list in SMEM via scalar prefetch) for large graphs.
    """
    src = edge_index[0]
    dst = edge_index[1]
    loop = jnp.arange(num_nodes, dtype=edge_index.dtype)
    src = jnp.concatenate([src, loop])
    dst = jnp.concatenate([dst, loop])
    a = jnp.zeros((num_nodes, num_nodes), jnp.float32).at[dst, src].add(1.0)
    deg = jnp.sum(a, axis=1)
    d_inv_sqrt = jnp.where(deg > 0, 1.0 / jnp.sqrt(deg), 0.0)
    return d_inv_sqrt[:, None] * a * d_inv_sqrt[None, :]


def _edge_mean_loss(feat, src, dst, w_row):
    """mean_e((feat[src]-feat[dst]) @ w) == mean_e(feat[src]-feat[dst]) @ w."""
    e = src.shape[0]
    md = (jnp.take(feat, src, axis=0).sum(axis=0)
          - jnp.take(feat, dst, axis=0).sum(axis=0)) / float(e)
    return jnp.dot(md, w_row[0])


def init_params(key, num_features, hidden, num_classes):
    ks = jax.random.split(key, 10)
    return {
        # GCNConv weights (Fin, Fout), biases (1, Fout)
        "conv1_w": 0.1 * jax.random.normal(ks[0], (num_features, hidden), jnp.float32),
        "conv1_b": 0.1 * jax.random.normal(ks[1], (1, hidden), jnp.float32),
        "conv2_w": 0.1 * jax.random.normal(ks[2], (hidden, num_classes), jnp.float32),
        "conv2_b": 0.1 * jax.random.normal(ks[3], (1, num_classes), jnp.float32),
        # Linear(D, 1): stored as (1, D) = torch .weight layout (pre-transposed row)
        "score1_w": 0.1 * jax.random.normal(ks[4], (1, num_features), jnp.float32),
        "score1_b": 0.1 * jax.random.normal(ks[5], (1, 1), jnp.float32),
        "score2_w": 0.1 * jax.random.normal(ks[6], (1, hidden), jnp.float32),
        "score2_b": 0.1 * jax.random.normal(ks[7], (1, 1), jnp.float32),
        "score3_w": 0.1 * jax.random.normal(ks[8], (1, num_classes), jnp.float32),
        "score3_b": 0.1 * jax.random.normal(ks[9], (1, 1), jnp.float32),
        # self.sum = Linear(3, 1) is defined in the torch __init__ but never used
        # in forward, so it is omitted here.
    }


def net_forward(params, x, pos_edge_index, neg_edge_index, edge_index, a_hat=None):
    n, f = x.shape
    hid = params["conv1_w"].shape[1]
    c = params["conv2_w"].shape[1]

    total = jnp.concatenate([pos_edge_index, neg_edge_index], axis=-1)
    src, dst = total[0], total[1]
    e = total.shape[1]

    if a_hat is None:
        a_hat = gcn_norm_adj(edge_index, n)

    # ---- pad everything once to 128-aligned, lane-dense shapes ---------------
    n_p = _round_up(n, 128)
    f_p = _round_up(f, 128)
    h_p = _round_up(hid, 128)
    c_p = _round_up(c, 128)
    e_p = _round_up(e, 128)

    x_p = _pad2(x, (n_p, f_p))
    a_p = _pad2(a_hat, (n_p, n_p))
    w1 = _pad2(params["conv1_w"], (f_p, h_p))
    b1 = _pad2(params["conv1_b"], (1, h_p))
    w2 = _pad2(params["conv2_w"], (h_p, c_p))
    b2 = _pad2(params["conv2_b"], (1, c_p))

    # ---- score-loss terms 1 & 2 (o1/o2 are dead in the torch forward) --------
    l1 = _edge_mean_loss(x, src, dst, params["score1_w"])

    # ---- GCN layer 1: relu(A_hat @ (X @ W1) + b1) -----------------------------
    h1_p = gcn_layer(x_p, w1, b1, a_p, apply_relu=True)
    l2 = _edge_mean_loss(h1_p[:n, :hid], src, dst, params["score2_w"])

    # ---- GCN layer 2 (no relu) ------------------------------------------------
    z_p = gcn_layer(h1_p, w2, b2, a_p, apply_relu=False)

    # ---- head 3: transposed gather -> lane-dense Pallas score kernel ----------
    # TODO(synk): fuse this gather into the score kernel with scalar-prefetch
    # row-gather BlockSpecs to avoid materializing dist3 in HBM.
    z_t = z_p.T                                                    # (c_p, n_p)
    d3_t = jnp.take(z_t, src, axis=1) - jnp.take(z_t, dst, axis=1)  # (c_p, e)
    d3_t = _pad2(d3_t, (c_p, e_p))
    w3 = _pad2(params["score3_w"], (1, c_p))
    o_pad, l3 = score_layer(d3_t, w3, params["score3_b"], e)
    o3 = o_pad[0, :e]

    score_loss = l1 + l2 + l3[0, 0]
    return o3, score_loss


# ----------------------------------------------------------------------------
if __name__ == "__main__":
    key = jax.random.PRNGKey(0)
    k_x, k_p, k_e, k_pe, k_ne = jax.random.split(key, 5)

    # Small synthetic "Planetoid-like" graph.
    num_nodes = 8
    num_features = 16
    hidden = 32
    num_classes = 4
    num_edges = 12
    num_pos = 4
    num_neg = 4

    x = jax.random.normal(k_x, (num_nodes, num_features), jnp.float32)
    edge_index = jax.random.randint(k_e, (2, num_edges), 0, num_nodes, jnp.int32)
    pos_edge_index = jax.random.randint(k_pe, (2, num_pos), 0, num_nodes, jnp.int32)
    neg_edge_index = jax.random.randint(k_ne, (2, num_neg), 0, num_nodes, jnp.int32)

    params = init_params(k_p, num_features, hidden, num_classes)

    # A_hat depends only on the (fixed) graph -> build once, outside the forward.
    a_hat = gcn_norm_adj(edge_index, num_nodes)

    fwd = jax.jit(net_forward)
    o3, score_loss = fwd(params, x, pos_edge_index, neg_edge_index, edge_index, a_hat)
    jax.block_until_ready((o3, score_loss))

    assert o3.shape == (num_pos + num_neg,)
    assert score_loss.shape == ()
    assert jnp.all(jnp.isfinite(o3)) and jnp.isfinite(score_loss)
    print("KERNEL_OK")
</pallas_src>

<mosaic_0001>
module attributes {stable_mosaic.version = 11 : i64} {
  func.func @_matmul_kernel(%arg0: i32, %arg1: i32, %arg2: i32, %arg3: memref<128x128xf32, #tpu.memory_space<vmem>>, %arg4: memref<128x128xf32, #tpu.memory_space<vmem>>, %arg5: memref<1x128xf32, #tpu.memory_space<vmem>>, %arg6: memref<128x128xf32, #tpu.memory_space<vmem>>, %arg7: memref<128x128xf32, #tpu.memory_space<vmem>>) attributes {dimension_semantics = [#tpu.dimension_semantics<parallel>, #tpu.dimension_semantics<parallel>, #tpu.dimension_semantics<arbitrary>], iteration_bounds = array<i64: 1, 1, 1>, scalar_prefetch = 0 : i64, scratch_operands = 1 : i64, tpu.core_type = #tpu.core_type<tc>, window_params = [{transform_indices = @transform_0, window_bounds = array<i64: 128, 128>}, {transform_indices = @transform_1, window_bounds = array<i64: 128, 128>}, {transform_indices = @transform_2, window_bounds = array<i64: 1, 128>}, {transform_indices = @transform_3, window_bounds = array<i64: 128, 128>}]} {
    %c0_i32 = arith.constant 0 : i32
    %0 = arith.cmpi eq, %arg2, %c0_i32 : i32
    %1 = arith.extui %0 : i1 to i32
    %c0_i32_0 = arith.constant 0 : i32
    %2 = arith.cmpi ne, %1, %c0_i32_0 : i32
    scf.if %2 {
      %cst_10 = arith.constant 0.000000e+00 : f32
      %12 = vector.broadcast %cst_10 : f32 to vector<128x128xf32>
      %c0_11 = arith.constant 0 : index
      %c0_12 = arith.constant 0 : index
      %13 = vector.load %arg7[%c0_11, %c0_12] : memref<128x128xf32, #tpu.memory_space<vmem>>, vector<128x128xf32>
      tpu.vector_store %arg7[%c0_11, %c0_12], %12 {strides = array<i32>} : memref<128x128xf32, #tpu.memory_space<vmem>>, vector<128x128xf32>,
    } else {
    }
    %c0 = arith.constant 0 : index
    %c0_1 = arith.constant 0 : index
    %3 = vector.load %arg7[%c0, %c0_1] : memref<128x128xf32, #tpu.memory_space<vmem>>, vector<128x128xf32>
    %c0_2 = arith.constant 0 : index
    %c0_3 = arith.constant 0 : index
    %4 = vector.load %arg3[%c0_2, %c0_3] : memref<128x128xf32, #tpu.memory_space<vmem>>, vector<128x128xf32>
    %c0_4 = arith.constant 0 : index
    %c0_5 = arith.constant 0 : index
    %5 = vector.load %arg4[%c0_4, %c0_5] : memref<128x128xf32, #tpu.memory_space<vmem>>, vector<128x128xf32>
    %cst = arith.constant dense<0.000000e+00> : vector<128x128xf32>
    %6 = tpu.matmul %4, %5, %cst {dimension_numbers = #tpu.dot_dimension_numbers<[1], [0], [0], [1], [0, 0, 1, 1], [], []>} : vector<128x128xf32>, vector<128x128xf32>, vector<128x128xf32> -> vector<128x128xf32>
    %7 = arith.addf %3, %6 : vector<128x128xf32>
    %c0_6 = arith.constant 0 : index
    %c0_7 = arith.constant 0 : index
    %8 = vector.load %arg7[%c0_6, %c0_7] : memref<128x128xf32, #tpu.memory_space<vmem>>, vector<128x128xf32>
    tpu.vector_store %arg7[%c0_6, %c0_7], %7 {strides = array<i32>} : memref<128x128xf32, #tpu.memory_space<vmem>>, vector<128x128xf32>,
    %c0_i32_8 = arith.constant 0 : i32
    %9 = arith.cmpi eq, %arg2, %c0_i32_8 : i32
    %10 = arith.extui %9 : i1 to i32
    %c0_i32_9 = arith.constant 0 : i32
    %11 = arith.cmpi ne, %10, %c0_i32_9 : i32
    scf.if %11 {
      %c0_10 = arith.constant 0 : index
      %c0_11 = arith.constant 0 : index
      %12 = vector.load %arg7[%c0_10, %c0_11] : memref<128x128xf32, #tpu.memory_space<vmem>>, vector<128x128xf32>
      %c0_12 = arith.constant 0 : index
      %c0_13 = arith.constant 0 : index
      %13 = vector.load %arg5[%c0_12, %c0_13] : memref<1x128xf32, #tpu.memory_space<vmem>>, vector<1x128xf32>
      %14 = vector.broadcast %13 : vector<1x128xf32> to vector<128x128xf32>
      %15 = arith.addf %12, %14 : vector<128x128xf32>
      %cst_14 = arith.constant 0.000000e+00 : f32
      %16 = vector.broadcast %cst_14 : f32 to vector<128x128xf32>
      %17 = arith.maximumf %15, %16 : vector<128x128xf32>
      %c0_15 = arith.constant 0 : index
      %c0_16 = arith.constant 0 : index
      %18 = vector.load %arg6[%c0_15, %c0_16] : memref<128x128xf32, #tpu.memory_space<vmem>>, vector<128x128xf32>
      tpu.vector_store %arg6[%c0_15, %c0_16], %17 {strides = array<i32>} : memref<128x128xf32, #tpu.memory_space<vmem>>, vector<128x128xf32>,
    } else {
    }
    return
  }
  func.func @transform_0(%arg0: i32, %arg1: i32, %arg2: i32) -> (i32, i32) {
    %c0_i32 = arith.constant 0 : i32
    return %arg0, %arg2 : i32, i32
  }
  func.func @transform_1(%arg0: i32, %arg1: i32, %arg2: i32) -> (i32, i32) {
    %c0_i32 = arith.constant 0 : i32
    return %arg2, %arg1 : i32, i32
  }
  func.func @transform_2(%arg0: i32, %arg1: i32, %arg2: i32) -> (i32, i32) {
    %c0_i32 = arith.constant 0 : i32
    %c0_i32_0 = arith.constant 0 : i32
    return %c0_i32, %arg1 : i32, i32
  }
  func.func @transform_3(%arg0: i32, %arg1: i32, %arg2: i32) -> (i32, i32) {
    %c0_i32 = arith.constant 0 : i32
    return %arg0, %arg1 : i32, i32
  }
}

module attributes {stable_mosaic.version = 11 : i64} {
  func.func @_matmul_kernel(%arg0: i32, %arg1: i32, %arg2: i32, %arg3: memref<128x128xf32, #tpu.memory_space<vmem>>, %arg4: memref<128x128xf32, #tpu.memory_space<vmem>>, %arg5: memref<1x128xf32, #tpu.memory_space<vmem>>, %arg6: memref<128x128xf32, #tpu.memory_space<vmem>>, %arg7: memref<128x128xf32, #tpu.memory_space<vmem>>) attributes {dimension_semantics = [#tpu.dimension_semantics<parallel>, #tpu.dimension_semantics<parallel>, #tpu.dimension_semantics<arbitrary>], iteration_bounds = array<i64: 1, 1, 1>, scalar_prefetch = 0 : i64, scratch_operands = 1 : i64, tpu.core_type = #tpu.core_type<tc>, window_params = [{transform_indices = @transform_0, window_bounds = array<i64: 128, 128>}, {transform_indices = @transform_1, window_bounds = array<i64: 128, 128>}, {transform_indices = @transform_2, window_bounds = array<i64: 1, 128>}, {transform_indices = @transform_3, window_bounds = array<i64: 128, 128>}]} {
    %c0_i32 = arith.constant 0 : i32
    %0 = arith.cmpi eq, %arg2, %c0_i32 : i32
    %1 = arith.extui %0 : i1 to i32
    %c0_i32_0 = arith.constant 0 : i32
    %2 = arith.cmpi ne, %1, %c0_i32_0 : i32
    scf.if %2 {
      %cst_10 = arith.constant 0.000000e+00 : f32
      %12 = vector.broadcast %cst_10 : f32 to vector<128x128xf32>
      %c0_11 = arith.constant 0 : index
      %c0_12 = arith.constant 0 : index
      %13 = vector.load %arg7[%c0_11, %c0_12] : memref<128x128xf32, #tpu.memory_space<vmem>>, vector<128x128xf32>
      tpu.vector_store %arg7[%c0_11, %c0_12], %12 {strides = array<i32>} : memref<128x128xf32, #tpu.memory_space<vmem>>, vector<128x128xf32>,
    } else {
    }
    %c0 = arith.constant 0 : index
    %c0_1 = arith.constant 0 : index
    %3 = vector.load %arg7[%c0, %c0_1] : memref<128x128xf32, #tpu.memory_space<vmem>>, vector<128x128xf32>
    %c0_2 = arith.constant 0 : index
    %c0_3 = arith.constant 0 : index
    %4 = vector.load %arg3[%c0_2, %c0_3] : memref<128x128xf32, #tpu.memory_space<vmem>>, vector<128x128xf32>
    %c0_4 = arith.constant 0 : index
    %c0_5 = arith.constant 0 : index
    %5 = vector.load %arg4[%c0_4, %c0_5] : memref<128x128xf32, #tpu.memory_space<vmem>>, vector<128x128xf32>
    %cst = arith.constant dense<0.000000e+00> : vector<128x128xf32>
    %6 = tpu.matmul %4, %5, %cst {dimension_numbers = #tpu.dot_dimension_numbers<[1], [0], [0], [1], [0, 0, 1, 1], [], []>} : vector<128x128xf32>, vector<128x128xf32>, vector<128x128xf32> -> vector<128x128xf32>
    %7 = arith.addf %3, %6 : vector<128x128xf32>
    %c0_6 = arith.constant 0 : index
    %c0_7 = arith.constant 0 : index
    %8 = vector.load %arg7[%c0_6, %c0_7] : memref<128x128xf32, #tpu.memory_space<vmem>>, vector<128x128xf32>
    tpu.vector_store %arg7[%c0_6, %c0_7], %7 {strides = array<i32>} : memref<128x128xf32, #tpu.memory_space<vmem>>, vector<128x128xf32>,
    %c0_i32_8 = arith.constant 0 : i32
    %9 = arith.cmpi eq, %arg2, %c0_i32_8 : i32
    %10 = arith.extui %9 : i1 to i32
    %c0_i32_9 = arith.constant 0 : i32
    %11 = arith.cmpi ne, %10, %c0_i32_9 : i32
    scf.if %11 {
      %c0_10 = arith.constant 0 : index
      %c0_11 = arith.constant 0 : index
      %12 = vector.load %arg7[%c0_10, %c0_11] : memref<128x128xf32, #tpu.memory_space<vmem>>, vector<128x128xf32>
      %c0_12 = arith.constant 0 : index
      %c0_13 = arith.constant 0 : index
      %13 = vector.load %arg6[%c0_12, %c0_13] : memref<128x128xf32, #tpu.memory_space<vmem>>, vector<128x128xf32>
      tpu.vector_store %arg6[%c0_12, %c0_13], %12 {strides = array<i32>} : memref<128x128xf32, #tpu.memory_space<vmem>>, vector<128x128xf32>,
    } else {
    }
    return
  }
  func.func @transform_0(%arg0: i32, %arg1: i32, %arg2: i32) -> (i32, i32) {
    %c0_i32 = arith.constant 0 : i32
    return %arg0, %arg2 : i32, i32
  }
  func.func @transform_1(%arg0: i32, %arg1: i32, %arg2: i32) -> (i32, i32) {
    %c0_i32 = arith.constant 0 : i32
    return %arg2, %arg1 : i32, i32
  }
  func.func @transform_2(%arg0: i32, %arg1: i32, %arg2: i32) -> (i32, i32) {
    %c0_i32 = arith.constant 0 : i32
    %c0_i32_0 = arith.constant 0 : i32
    return %c0_i32, %arg1 : i32, i32
  }
  func.func @transform_3(%arg0: i32, %arg1: i32, %arg2: i32) -> (i32, i32) {
    %c0_i32 = arith.constant 0 : i32
    return %arg0, %arg1 : i32, i32
  }
}

module attributes {stable_mosaic.version = 11 : i64} {
  func.func @_score_kernel(%arg0: i32, %arg1: memref<1x128xf32, #tpu.memory_space<vmem>>, %arg2: memref<128x128xf32, #tpu.memory_space<vmem>>, %arg3: memref<1x1xf32, #tpu.memory_space<vmem>>, %arg4: memref<1x128xf32, #tpu.memory_space<vmem>>, %arg5: memref<1x1xf32, #tpu.memory_space<vmem>>) attributes {dimension_semantics = [#tpu.dimension_semantics<arbitrary>], iteration_bounds = array<i64: 1>, scalar_prefetch = 0 : i64, scratch_operands = 0 : i64, tpu.core_type = #tpu.core_type<tc>, window_params = [{pipeline_mode = #tpu.pipeline_mode<synchronous>, transform_indices = @transform_0, window_bounds = array<i64: 1, 128>}, {transform_indices = @transform_1, window_bounds = array<i64: 128, 128>}, {pipeline_mode = #tpu.pipeline_mode<synchronous>, transform_indices = @transform_2, window_bounds = array<i64: 1, 1>}, {transform_indices = @transform_3, window_bounds = array<i64: 1, 128>}, {pipeline_mode = #tpu.pipeline_mode<synchronous>, transform_indices = @transform_4, window_bounds = array<i64: 1, 1>}]} {
    %c0 = arith.constant 0 : index
    %c0_0 = arith.constant 0 : index
    %0 = vector.load %arg1[%c0, %c0_0] : memref<1x128xf32, #tpu.memory_space<vmem>>, vector<1x128xf32>
    %c0_1 = arith.constant 0 : index
    %c0_2 = arith.constant 0 : index
    %1 = vector.load %arg2[%c0_1, %c0_2] : memref<128x128xf32, #tpu.memory_space<vmem>>, vector<128x128xf32>
    %cst = arith.constant dense<0.000000e+00> : vector<1x128xf32>
    %2 = tpu.matmul %0, %1, %cst {dimension_numbers = #tpu.dot_dimension_numbers<[1], [0], [0], [1], [0, 0, 1, 1], [], []>} : vector<1x128xf32>, vector<128x128xf32>, vector<1x128xf32> -> vector<1x128xf32>
    %c0_3 = arith.constant 0 : index
    %c0_4 = arith.constant 0 : index
    %3 = vector.load %arg3[%c0_3, %c0_4] : memref<1x1xf32, #tpu.memory_space<vmem>>, vector<1x1xf32>
    %4 = vector.broadcast %3 : vector<1x1xf32> to vector<1x128xf32>
    %5 = arith.addf %2, %4 : vector<1x128xf32>
    %cst_5 = arith.constant 0.000000e+00 : f32
    %6 = vector.broadcast %cst_5 : f32 to vector<1x128xf32>
    %7 = arith.maximumf %5, %6 : vector<1x128xf32>
    %c0_6 = arith.constant 0 : index
    %c0_7 = arith.constant 0 : index
    %8 = vector.load %arg4[%c0_6, %c0_7] : memref<1x128xf32, #tpu.memory_space<vmem>>, vector<1x128xf32>
    tpu.vector_store %arg4[%c0_6, %c0_7], %7 {strides = array<i32>} : memref<1x128xf32, #tpu.memory_space<vmem>>, vector<1x128xf32>,
    %c0_i32 = arith.constant 0 : i32
    %9 = arith.cmpi eq, %arg0, %c0_i32 : i32
    %10 = arith.extui %9 : i1 to i32
    %c0_i32_8 = arith.constant 0 : i32
    %11 = arith.cmpi ne, %10, %c0_i32_8 : i32
    scf.if %11 {
      %cst_15 = arith.constant 0.000000e+00 : f32
      %19 = vector.broadcast %cst_15 : f32 to vector<1x1xf32>
      %c0_16 = arith.constant 0 : index
      %c0_17 = arith.constant 0 : index
      %20 = vector.load %arg5[%c0_16, %c0_17] : memref<1x1xf32, #tpu.memory_space<vmem>>, vector<1x1xf32>
      tpu.vector_store %arg5[%c0_16, %c0_17], %19 {strides = array<i32>} : memref<1x1xf32, #tpu.memory_space<vmem>>, vector<1x1xf32>,
    } else {
    }
    %c0_9 = arith.constant 0 : index
    %c0_10 = arith.constant 0 : index
    %12 = vector.load %arg5[%c0_9, %c0_10] : memref<1x1xf32, #tpu.memory_space<vmem>>, vector<1x1xf32>
    %cst_11 = arith.constant dense<0.000000e+00> : vector<1xf32>
    %13 = vector.multi_reduction <add>, %2, %cst_11 [1] : vector<1x128xf32> to vector<1xf32>
    %14 = vector.shape_cast %13 : vector<1xf32> to vector<1x1xf32>
    %cst_12 = arith.constant 1.250000e-01 : f32
    %15 = vector.broadcast %cst_12 : f32 to vector<1x1xf32>
    %16 = arith.mulf %14, %15 : vector<1x1xf32>
    %17 = arith.addf %12, %16 : vector<1x1xf32>
    %c0_13 = arith.constant 0 : index
    %c0_14 = arith.constant 0 : index
    %18 = vector.load %arg5[%c0_13, %c0_14] : memref<1x1xf32, #tpu.memory_space<vmem>>, vector<1x1xf32>
    tpu.vector_store %arg5[%c0_13, %c0_14], %17 {strides = array<i32>} : memref<1x1xf32, #tpu.memory_space<vmem>>, vector<1x1xf32>,
    return
  }
  func.func @transform_0(%arg0: i32) -> (i32, i32) {
    %c0_i32 = arith.constant 0 : i32
    %c0_i32_0 = arith.constant 0 : i32
    %c0_i32_1 = arith.constant 0 : i32
    return %c0_i32, %c0_i32_0 : i32, i32
  }
  func.func @transform_1(%arg0: i32) -> (i32, i32) {
    %c0_i32 = arith.constant 0 : i32
    %c0_i32_0 = arith.constant 0 : i32
    return %c0_i32, %arg0 : i32, i32
  }
  func.func @transform_2(%arg0: i32) -> (i32, i32) {
    %c0_i32 = arith.constant 0 : i32
    %c0_i32_0 = arith.constant 0 : i32
    %c0_i32_1 = arith.constant 0 : i32
    return %c0_i32, %c0_i32_0 : i32, i32
  }
  func.func @transform_3(%arg0: i32) -> (i32, i32) {
    %c0_i32 = arith.constant 0 : i32
    %c0_i32_0 = arith.constant 0 : i32
    return %c0_i32, %arg0 : i32, i32
  }
  func.func @transform_4(%arg0: i32) -> (i32, i32) {
    %c0_i32 = arith.constant 0 : i32
    %c0_i32_0 = arith.constant 0 : i32
    %c0_i32_1 = arith.constant 0 : i32
    return %c0_i32, %c0_i32_0 : i32, i32
  }
}

module attributes {stable_mosaic.version = 11 : i64} {
  func.func @_matmul_kernel(%arg0: i32, %arg1: i32, %arg2: i32, %arg3: memref<128x128xf32, #tpu.memory_space<vmem>>, %arg4: memref<128x128xf32, #tpu.memory_space<vmem>>, %arg5: memref<1x128xf32, #tpu.memory_space<vmem>>, %arg6: memref<128x128xf32, #tpu.memory_space<vmem>>, %arg7: memref<128x128xf32, #tpu.memory_space<vmem>>) attributes {dimension_semantics = [#tpu.dimension_semantics<parallel>, #tpu.dimension_semantics<parallel>, #tpu.dimension_semantics<arbitrary>], iteration_bounds = array<i64: 1, 1, 1>, scalar_prefetch = 0 : i64, scratch_operands = 1 : i64, tpu.core_type = #tpu.core_type<tc>, window_params = [{transform_indices = @transform_0, window_bounds = array<i64: 128, 128>}, {transform_indices = @transform_1, window_bounds = array<i64: 128, 128>}, {transform_indices = @transform_2, window_bounds = array<i64: 1, 128>}, {transform_indices = @transform_3, window_bounds = array<i64: 128, 128>}]} {
    %c0_i32 = arith.constant 0 : i32
    %0 = arith.cmpi eq, %arg2, %c0_i32 : i32
    %1 = arith.extui %0 : i1 to i32
    %c0_i32_0 = arith.constant 0 : i32
    %2 = arith.cmpi ne, %1, %c0_i32_0 : i32
    scf.if %2 {
      %cst_10 = arith.constant 0.000000e+00 : f32
      %12 = vector.broadcast %cst_10 : f32 to vector<128x128xf32>
      %c0_11 = arith.constant 0 : index
      %c0_12 = arith.constant 0 : index
      %13 = vector.load %arg7[%c0_11, %c0_12] : memref<128x128xf32, #tpu.memory_space<vmem>>, vector<128x128xf32>
      tpu.vector_store %arg7[%c0_11, %c0_12], %12 {strides = array<i32>} : memref<128x128xf32, #tpu.memory_space<vmem>>, vector<128x128xf32>,
    } else {
    }
    %c0 = arith.constant 0 : index
    %c0_1 = arith.constant 0 : index
    %3 = vector.load %arg7[%c0, %c0_1] : memref<128x128xf32, #tpu.memory_space<vmem>>, vector<128x128xf32>
    %c0_2 = arith.constant 0 : index
    %c0_3 = arith.constant 0 : index
    %4 = vector.load %arg3[%c0_2, %c0_3] : memref<128x128xf32, #tpu.memory_space<vmem>>, vector<128x128xf32>
    %c0_4 = arith.constant 0 : index
    %c0_5 = arith.constant 0 : index
    %5 = vector.load %arg4[%c0_4, %c0_5] : memref<128x128xf32, #tpu.memory_space<vmem>>, vector<128x128xf32>
    %cst = arith.constant dense<0.000000e+00> : vector<128x128xf32>
    %6 = tpu.matmul %4, %5, %cst {dimension_numbers = #tpu.dot_dimension_numbers<[1], [0], [0], [1], [0, 0, 1, 1], [], []>} : vector<128x128xf32>, vector<128x128xf32>, vector<128x128xf32> -> vector<128x128xf32>
    %7 = arith.addf %3, %6 : vector<128x128xf32>
    %c0_6 = arith.constant 0 : index
    %c0_7 = arith.constant 0 : index
    %8 = vector.load %arg7[%c0_6, %c0_7] : memref<128x128xf32, #tpu.memory_space<vmem>>, vector<128x128xf32>
    tpu.vector_store %arg7[%c0_6, %c0_7], %7 {strides = array<i32>} : memref<128x128xf32, #tpu.memory_space<vmem>>, vector<128x128xf32>,
    %c0_i32_8 = arith.constant 0 : i32
    %9 = arith.cmpi eq, %arg2, %c0_i32_8 : i32
    %10 = arith.extui %9 : i1 to i32
    %c0_i32_9 = arith.constant 0 : i32
    %11 = arith.cmpi ne, %10, %c0_i32_9 : i32
    scf.if %11 {
      %c0_10 = arith.constant 0 : index
      %c0_11 = arith.constant 0 : index
      %12 = vector.load %arg7[%c0_10, %c0_11] : memref<128x128xf32, #tpu.memory_space<vmem>>, vector<128x128xf32>
      %c0_12 = arith.constant 0 : index
      %c0_13 = arith.constant 0 : index
      %13 = vector.load %arg5[%c0_12, %c0_13] : memref<1x128xf32, #tpu.memory_space<vmem>>, vector<1x128xf32>
      %14 = vector.broadcast %13 : vector<1x128xf32> to vector<128x128xf32>
      %15 = arith.addf %12, %14 : vector<128x128xf32>
      %c0_14 = arith.constant 0 : index
      %c0_15 = arith.constant 0 : index
      %16 = vector.load %arg6[%c0_14, %c0_15] : memref<128x128xf32, #tpu.memory_space<vmem>>, vector<128x128xf32>
      tpu.vector_store %arg6[%c0_14, %c0_15], %15 {strides = array<i32>} : memref<128x128xf32, #tpu.memory_space<vmem>>, vector<128x128xf32>,
    } else {
    }
    return
  }
  func.func @transform_0(%arg0: i32, %arg1: i32, %arg2: i32) -> (i32, i32) {
    %c0_i32 = arith.constant 0 : i32
    return %arg0, %arg2 : i32, i32
  }
  func.func @transform_1(%arg0: i32, %arg1: i32, %arg2: i32) -> (i32, i32) {
    %c0_i32 = arith.constant 0 : i32
    return %arg2, %arg1 : i32, i32
  }
  func.func @transform_2(%arg0: i32, %arg1: i32, %arg2: i32) -> (i32, i32) {
    %c0_i32 = arith.constant 0 : i32
    %c0_i32_0 = arith.constant 0 : i32
    return %c0_i32, %arg1 : i32, i32
  }
  func.func @transform_3(%arg0: i32, %arg1: i32, %arg2: i32) -> (i32, i32) {
    %c0_i32 = arith.constant 0 : i32
    return %arg0, %arg1 : i32, i32
  }
}

</mosaic_0001>

<llo_original>
// kernel: net_forward.6
$region0: #{net_forward.6}
  #allocation0 [shape = 'u32[]', space=smem, size = 0x4, offset = 0x4, fixed_abs, tag = 'smem constant byte address 0x4 - core index']
  #allocation1 [shape = 'u32[72,128]{1,0:T(1,128)}', space=vmem, size = 0x9000, scoped, tag = 'internal scratch']
  #allocation2 [shape = 'f32[128,128]{1,0:T(8,128)}', space=vmem, size = 0x10000, scoped, tag = 'scratch operand']
  %s0 = inlined_call_operand.vmem [shape: f32[128,128], index: 0, kind: input, shape index: {}]
  %s1 = inlined_call_operand.vmem [shape: f32[128,128], index: 1, kind: input, shape index: {}]
  %s2 = inlined_call_operand.vmem [shape: f32[1,128], index: 2, kind: input, shape index: {}]
  %s3 = inlined_call_operand.vmem [shape: f32[128,128], index: 3, kind: output, shape index: {}]
  %s4 = sld [smem:[#allocation0]]
  $region30: #{net_forward.6} parent=0
    _
  %s6 = ssub.s32 1, %s4
  %s7 = scalar_select 0, %s6, %s4
  // Predicated region
  $region2: #{net_forward.6} parent=0 // pred_check
    _
  $region3: #{net_forward.6} parent=0 // pred_check_branch
    %9 = sbr.rel (0) target = $region5
  $region4: #{net_forward.6} parent=0 // pred_region
    _
  $region5: #{net_forward.6} parent=0 // pred_fallthru
    _
  // Predicated region
  $region6: #{net_forward.6} parent=0 // pred_check
    _
  $region7: #{net_forward.6} parent=0 // pred_check_branch
    %11 = sbr.rel (0) target = $region9
  $region8: #{net_forward.6} parent=0 // pred_region
    _
  $region9: #{net_forward.6} parent=0 // pred_fallthru
    _
  // Predicated region
  $region10: #{net_forward.6} parent=0 // pred_check
    _
  $region11: #{net_forward.6} parent=0 // pred_check_branch
    %13 = sbr.rel (0) target = $region13
  $region12: #{net_forward.6} parent=0 // pred_region
    _
  $region13: #{net_forward.6} parent=0 // pred_fallthru
    _
  %p14 = scmp.eq.s32.totalorder 0, 0
  // Predicated region
  $region14: #{net_forward.6} parent=0 // pred_check
    %p15 = pneg %p14
  $region15: #{net_forward.6} parent=0 // pred_check_branch
    %17 = sbr.rel (%p15) target = $region17
  $region16: #{net_forward.6} parent=0 // pred_region
    %18 = vst [vmem:[#allocation2] sm:$0xff] 0.0
    %19 = vst [vmem:[#allocation2 + $0x8] sm:$0xff] 0.0
    %20 = vst [vmem:[#allocation2 + $0x10] sm:$0xff] 0.0
    %21 = vst [vmem:[#allocation2 + $0x18] sm:$0xff] 0.0
    %22 = vst [vmem:[#allocation2 + $0x20] sm:$0xff] 0.0
    %23 = vst [vmem:[#allocation2 + $0x28] sm:$0xff] 0.0
    %24 = vst [vmem:[#allocation2 + $0x30] sm:$0xff] 0.0
    %25 = vst [vmem:[#allocation2 + $0x38] sm:$0xff] 0.0
    %26 = vst [vmem:[#allocation2 + $0x40] sm:$0xff] 0.0
    %27 = vst [vmem:[#allocation2 + $0x48] sm:$0xff] 0.0
    %28 = vst [vmem:[#allocation2 + $0x50] sm:$0xff] 0.0
    %29 = vst [vmem:[#allocation2 + $0x58] sm:$0xff] 0.0
    %30 = vst [vmem:[#allocation2 + $0x60] sm:$0xff] 0.0
    %31 = vst [vmem:[#allocation2 + $0x68] sm:$0xff] 0.0
    %32 = vst [vmem:[#allocation2 + $0x70] sm:$0xff] 0.0
    %33 = vst [vmem:[#allocation2 + $0x78] sm:$0xff] 0.0
  $region17: #{net_forward.6} parent=0 // pred_fallthru
    _
  %v34 = vld [vmem:[#allocation2] sm:$0xff]
  %v35 = vld [vmem:[#allocation2 + $0x8] sm:$0xff]
  %v36 = vld [vmem:[#allocation2 + $0x10] sm:$0xff]
  %v37 = vld [vmem:[#allocation2 + $0x18] sm:$0xff]
  %v38 = vld [vmem:[#allocation2 + $0x20] sm:$0xff]
  %v39 = vld [vmem:[#allocation2 + $0x28] sm:$0xff]
  %v40 = vld [vmem:[#allocation2 + $0x30] sm:$0xff]
  %v41 = vld [vmem:[#allocation2 + $0x38] sm:$0xff]
  %v42 = vld [vmem:[#allocation2 + $0x40] sm:$0xff]
  %v43 = vld [vmem:[#allocation2 + $0x48] sm:$0xff]
  %v44 = vld [vmem:[#allocation2 + $0x50] sm:$0xff]
  %v45 = vld [vmem:[#allocation2 + $0x58] sm:$0xff]
  %v46 = vld [vmem:[#allocation2 + $0x60] sm:$0xff]
  %v47 = vld [vmem:[#allocation2 + $0x68] sm:$0xff]
  %v48 = vld [vmem:[#allocation2 + $0x70] sm:$0xff]
  %v49 = vld [vmem:[#allocation2 + $0x78] sm:$0xff]
  %v50 = vld [vmem:[%s0] sm:$0xff]
  %v51 = vld [vmem:[%s0 + $0x8] sm:$0xff]
  %v52 = vld [vmem:[%s0 + $0x10] sm:$0xff]
  %v53 = vld [vmem:[%s0 + $0x18] sm:$0xff]
  %v54 = vld [vmem:[%s0 + $0x20] sm:$0xff]
  %v55 = vld [vmem:[%s0 + $0x28] sm:$0xff]
  %v56 = vld [vmem:[%s0 + $0x30] sm:$0xff]
  %v57 = vld [vmem:[%s0 + $0x38] sm:$0xff]
  %v58 = vld [vmem:[%s0 + $0x40] sm:$0xff]
  %v59 = vld [vmem:[%s0 + $0x48] sm:$0xff]
  %v60 = vld [vmem:[%s0 + $0x50] sm:$0xff]
  %v61 = vld [vmem:[%s0 + $0x58] sm:$0xff]
  %v62 = vld [vmem:[%s0 + $0x60] sm:$0xff]
  %v63 = vld [vmem:[%s0 + $0x68] sm:$0xff]
  %v64 = vld [vmem:[%s0 + $0x70] sm:$0xff]
  %v65 = vld [vmem:[%s0 + $0x78] sm:$0xff]
  %v66 = vld [vmem:[%s1] sm:$0xff]
  %v67 = vld [vmem:[%s1 + $0x8] sm:$0xff]
  %v68 = vld [vmem:[%s1 + $0x10] sm:$0xff]
  %v69 = vld [vmem:[%s1 + $0x18] sm:$0xff]
  %v70 = vld [vmem:[%s1 + $0x20] sm:$0xff]
  %v71 = vld [vmem:[%s1 + $0x28] sm:$0xff]
  %v72 = vld [vmem:[%s1 + $0x30] sm:$0xff]
  %v73 = vld [vmem:[%s1 + $0x38] sm:$0xff]
  %v74 = vld [vmem:[%s1 + $0x40] sm:$0xff]
  %v75 = vld [vmem:[%s1 + $0x48] sm:$0xff]
  %v76 = vld [vmem:[%s1 + $0x50] sm:$0xff]
  %v77 = vld [vmem:[%s1 + $0x58] sm:$0xff]
  %v78 = vld [vmem:[%s1 + $0x60] sm:$0xff]
  %v79 = vld [vmem:[%s1 + $0x68] sm:$0xff]
  %v80 = vld [vmem:[%s1 + $0x70] sm:$0xff]
  %v81 = vld [vmem:[%s1 + $0x78] sm:$0xff]
  %82 = vmatpush.msra.mxu0 %v81
  %83 = vmatpush.msra.mxu0 %v80
  %84 = vmatpush.msra.mxu0 %v79
  %85 = vmatpush.msra.mxu0 %v78
  %86 = vmatpush.msra.mxu0 %v77
  %87 = vmatpush.msra.mxu0 %v76
  %88 = vmatpush.msra.mxu0 %v75
  %89 = vmatpush.msra.mxu0 %v74
  %90 = vmatpush.msra.mxu0 %v73
  %91 = vmatpush.msra.mxu0 %v72
  %92 = vmatpush.msra.mxu0 %v71
  %93 = vmatpush.msra.mxu0 %v70
  %94 = vmatpush.msra.mxu0 %v69
  %95 = vmatpush.msra.mxu0 %v68
  %96 = vmatpush.msra.mxu0 %v67
  %97 = vmatpush.msra.mxu0 %v66
  %98 = vmatmul.f32.gmra.mxu0 %v50
  %v99 = vpop.f32.mrf.mxu0
  %v100 = vadd.f32 0.0, %v99
  %101 = vmatmul.f32.gmra.mxu0 %v51
  %v102 = vpop.f32.mrf.mxu0
  %v103 = vadd.f32 0.0, %v102
  %104 = vmatmul.f32.gmra.mxu0 %v52
  %v105 = vpop.f32.mrf.mxu0
  %v106 = vadd.f32 0.0, %v105
  %107 = vmatmul.f32.gmra.mxu0 %v53
  %v108 = vpop.f32.mrf.mxu0
  %v109 = vadd.f32 0.0, %v108
  %110 = vmatmul.f32.gmra.mxu0 %v54
  %v111 = vpop.f32.mrf.mxu0
  %v112 = vadd.f32 0.0, %v111
  %113 = vmatmul.f32.gmra.mxu0 %v55
  %v114 = vpop.f32.mrf.mxu0
  %v115 = vadd.f32 0.0, %v114
  %116 = vmatmul.f32.gmra.mxu0 %v56
  %v117 = vpop.f32.mrf.mxu0
  %v118 = vadd.f32 0.0, %v117
  %119 = vmatmul.f32.gmra.mxu0 %v57
  %v120 = vpop.f32.mrf.mxu0
  %v121 = vadd.f32 0.0, %v120
  %122 = vmatmul.f32.gmra.mxu0 %v58
  %v123 = vpop.f32.mrf.mxu0
  %v124 = vadd.f32 0.0, %v123
  %125 = vmatmul.f32.gmra.mxu0 %v59
  %v126 = vpop.f32.mrf.mxu0
  %v127 = vadd.f32 0.0, %v126
  %128 = vmatmul.f32.gmra.mxu0 %v60
  %v129 = vpop.f32.mrf.mxu0
  %v130 = vadd.f32 0.0, %v129
  %131 = vmatmul.f32.gmra.mxu0 %v61
  %v132 = vpop.f32.mrf.mxu0
  %v133 = vadd.f32 0.0, %v132
  %134 = vmatmul.f32.gmra.mxu0 %v62
  %v135 = vpop.f32.mrf.mxu0
  %v136 = vadd.f32 0.0, %v135
  %137 = vmatmul.f32.gmra.mxu0 %v63
  %v138 = vpop.f32.mrf.mxu0
  %v139 = vadd.f32 0.0, %v138
  %140 = vmatmul.f32.gmra.mxu0 %v64
  %v141 = vpop.f32.mrf.mxu0
  %v142 = vadd.f32 0.0, %v141
  %143 = vmatmul.f32.gmra.mxu0 %v65
  %v144 = vpop.f32.mrf.mxu0
  %v145 = vadd.f32 0.0, %v144
  %146 = vdwg.mxu0
  %v147 = vadd.f32 %v34, %v100
  %v148 = vadd.f32 %v35, %v103
  %v149 = vadd.f32 %v36, %v106
  %v150 = vadd.f32 %v37, %v109
  %v151 = vadd.f32 %v38, %v112
  %v152 = vadd.f32 %v39, %v115
  %v153 = vadd.f32 %v40, %v118
  %v154 = vadd.f32 %v41, %v121
  %v155 = vadd.f32 %v42, %v124
  %v156 = vadd.f32 %v43, %v127
  %v157 = vadd.f32 %v44, %v130
  %v158 = vadd.f32 %v45, %v133
  %v159 = vadd.f32 %v46, %v136
  %v160 = vadd.f32 %v47, %v139
  %v161 = vadd.f32 %v48, %v142
  %v162 = vadd.f32 %v49, %v145
  %163 = vst [vmem:[#allocation2] sm:$0xff] %v147
  %164 = vst [vmem:[#allocation2 + $0x8] sm:$0xff] %v148
  %165 = vst [vmem:[#allocation2 + $0x10] sm:$0xff] %v149
  %166 = vst [vmem:[#allocation2 + $0x18] sm:$0xff] %v150
  %167 = vst [vmem:[#allocation2 + $0x20] sm:$0xff] %v151
  %168 = vst [vmem:[#allocation2 + $0x28] sm:$0xff] %v152
  %169 = vst [vmem:[#allocation2 + $0x30] sm:$0xff] %v153
  %170 = vst [vmem:[#allocation2 + $0x38] sm:$0xff] %v154
  %171 = vst [vmem:[#allocation2 + $0x40] sm:$0xff] %v155
  %172 = vst [vmem:[#allocation2 + $0x48] sm:$0xff] %v156
  %173 = vst [vmem:[#allocation2 + $0x50] sm:$0xff] %v157
  %174 = vst [vmem:[#allocation2 + $0x58] sm:$0xff] %v158
  %175 = vst [vmem:[#allocation2 + $0x60] sm:$0xff] %v159
  %176 = vst [vmem:[#allocation2 + $0x68] sm:$0xff] %v160
  %177 = vst [vmem:[#allocation2 + $0x70] sm:$0xff] %v161
  %178 = vst [vmem:[#allocation2 + $0x78] sm:$0xff] %v162
  // Predicated region
  $region18: #{net_forward.6} parent=0 // pred_check
    %p179 = pneg %p14
  $region19: #{net_forward.6} parent=0 // pred_check_branch
    %181 = sbr.rel (%p179) target = $region21
  $region20: #{net_forward.6} parent=0 // pred_region
    %v182 = vld [vmem:[#allocation2] sm:$0xff]
    %v183 = vld [vmem:[#allocation2 + $0x8] sm:$0xff]
    %v184 = vld [vmem:[#allocation2 + $0x10] sm:$0xff]
    %v185 = vld [vmem:[#allocation2 + $0x18] sm:$0xff]
    %v186 = vld [vmem:[#allocation2 + $0x20] sm:$0xff]
    %v187 = vld [vmem:[#allocation2 + $0x28] sm:$0xff]
    %v188 = vld [vmem:[#allocation2 + $0x30] sm:$0xff]
    %v189 = vld [vmem:[#allocation2 + $0x38] sm:$0xff]
    %v190 = vld [vmem:[#allocation2 + $0x40] sm:$0xff]
    %v191 = vld [vmem:[#allocation2 + $0x48] sm:$0xff]
    %v192 = vld [vmem:[#allocation2 + $0x50] sm:$0xff]
    %v193 = vld [vmem:[#allocation2 + $0x58] sm:$0xff]
    %v194 = vld [vmem:[#allocation2 + $0x60] sm:$0xff]
    %v195 = vld [vmem:[#allocation2 + $0x68] sm:$0xff]
    %v196 = vld [vmem:[#allocation2 + $0x70] sm:$0xff]
    %v197 = vld [vmem:[#allocation2 + $0x78] sm:$0xff]
    %v198 = vld [vmem:[%s2] sm:$0x1]
    %v200 = vperm.slane %v198, 0
    %v202 = vadd.f32 %v182, %v200
    %v203 = vadd.f32 %v183, %v200
    %v204 = vadd.f32 %v184, %v200
    %v205 = vadd.f32 %v185, %v200
    %v206 = vadd.f32 %v186, %v200
    %v207 = vadd.f32 %v187, %v200
    %v208 = vadd.f32 %v188, %v200
    %v209 = vadd.f32 %v189, %v200
    %v210 = vadd.f32 %v190, %v200
    %v211 = vadd.f32 %v191, %v200
    %v212 = vadd.f32 %v192, %v200
    %v213 = vadd.f32 %v193, %v200
    %v214 = vadd.f32 %v194, %v200
    %v215 = vadd.f32 %v195, %v200
    %v216 = vadd.f32 %v196, %v200
    %v217 = vadd.f32 %v197, %v200
    %v218 = vmax.f32 %v202, 0.0
    %v219 = vmax.f32 %v203, 0.0
    %v220 = vmax.f32 %v204, 0.0
    %v221 = vmax.f32 %v205, 0.0
    %v222 = vmax.f32 %v206, 0.0
    %v223 = vmax.f32 %v207, 0.0
    %v224 = vmax.f32 %v208, 0.0
    %v225 = vmax.f32 %v209, 0.0
    %v226 = vmax.f32 %v210, 0.0
    %v227 = vmax.f32 %v211, 0.0
    %v228 = vmax.f32 %v212, 0.0
    %v229 = vmax.f32 %v213, 0.0
    %v230 = vmax.f32 %v214, 0.0
    %v231 = vmax.f32 %v215, 0.0
    %v232 = vmax.f32 %v216, 0.0
    %v233 = vmax.f32 %v217, 0.0
    %234 = vst [vmem:[%s3] sm:$0xff] %v218
    %235 = vst [vmem:[%s3 + $0x8] sm:$0xff] %v219
    %236 = vst [vmem:[%s3 + $0x10] sm:$0xff] %v220
    %237 = vst [vmem:[%s3 + $0x18] sm:$0xff] %v221
    %238 = vst [vmem:[%s3 + $0x20] sm:$0xff] %v222
    %239 = vst [vmem:[%s3 + $0x28] sm:$0xff] %v223
    %240 = vst [vmem:[%s3 + $0x30] sm:$0xff] %v224
    %241 = vst [vmem:[%s3 + $0x38] sm:$0xff] %v225
    %242 = vst [vmem:[%s3 + $0x40] sm:$0xff] %v226
    %243 = vst [vmem:[%s3 + $0x48] sm:$0xff] %v227
    %244 = vst [vmem:[%s3 + $0x50] sm:$0xff] %v228
    %245 = vst [vmem:[%s3 + $0x58] sm:$0xff] %v229
    %246 = vst [vmem:[%s3 + $0x60] sm:$0xff] %v230
    %247 = vst [vmem:[%s3 + $0x68] sm:$0xff] %v231
    %248 = vst [vmem:[%s3 + $0x70] sm:$0xff] %v232
    %249 = vst [vmem:[%s3 + $0x78] sm:$0xff] %v233
  $region21: #{net_forward.6} parent=0 // pred_fallthru
    _
  // Predicated region
  $region22: #{net_forward.6} parent=0 // pred_check
    _
  $region23: #{net_forward.6} parent=0 // pred_check_branch
    %251 = sbr.rel (0) target = $region25
  $region24: #{net_forward.6} parent=0 // pred_region
    _
  $region25: #{net_forward.6} parent=0 // pred_fallthru
    _
  // Predicated region
  $region26: #{net_forward.6} parent=0 // pred_check
    _
  $region27: #{net_forward.6} parent=0 // pred_check_branch
    %253 = sbr.rel (0) target = $region29
  $region28: #{net_forward.6} parent=0 // pred_region
    _
  $region29: #{net_forward.6} parent=0 // pred_fallthru
    _

// kernel: net_forward.9
$region0: #{net_forward.9}
  #allocation0 [shape = 'u32[]', space=smem, size = 0x4, offset = 0x4, fixed_abs, tag = 'smem constant byte address 0x4 - core index']
  #allocation1 [shape = 'u32[72,128]{1,0:T(1,128)}', space=vmem, size = 0x9000, scoped, tag = 'internal scratch']
  #allocation2 [shape = 'f32[1,1]{1,0:T(1,128)S(1)}', space=vmem, size = 0x200, scoped, tag = 'scoped memory for net_forward.9']
  %s0 = inlined_call_operand.vmem [shape: f32[1,128], index: 0, kind: input, shape index: {}]
  %s1 = inlined_call_operand.vmem [shape: f32[128,128], index: 1, kind: input, shape index: {}]
  %s2 = inlined_call_operand.<no memory space> [shape: f32[1,1], index: 2, kind: input, shape index: {}]
  %s3 = inlined_call_operand.vmem [shape: f32[1,128], index: 3, kind: output, shape index: {0}]
  %s4 = inlined_call_operand.hbm [shape: f32[1,1], index: 4, kind: output, shape index: {1}]
  %5 = xla_tuple %s3, %s4
  %s6 = sld [smem:[#allocation0]]
  $region34: #{net_forward.9} parent=0
    _
  %s8 = ssub.s32 1, %s6
  %s9 = scalar_select 0, %s8, %s6
  %v10 = vstv %s2
  %11 = vst [vmem:[#allocation2] sm:$0x1] %v10
  $region1: #{net_forward.9} parent=0
    #allocation3 [shape = 'u8[512]{0}', space=vmem, size = 0x400, scoped, tag = 'output window, operand 1, single buffered']
    #allocation4 [shape = 's32[1]{0}', space=sflag, size = 0x4, scoped, tag = 'scoped memory for net_forward.9']
    %12 = vsyncpa [#allocation4], 0
    // Predicated region
    $region2: #{net_forward.9} parent=1 // pred_check
      _
    $region3: #{net_forward.9} parent=1 // pred_check_branch
      %14 = sbr.rel (0) target = $region5
    $region4: #{net_forward.9} parent=1 // pred_region
      _
    $region5: #{net_forward.9} parent=1 // pred_fallthru
      _
    // Predicated region
    $region6: #{net_forward.9} parent=1 // pred_check
      _
    $region7: #{net_forward.9} parent=1 // pred_check_branch
      %16 = sbr.rel (0) target = $region9
    $region8: #{net_forward.9} parent=1 // pred_region
      _
    $region9: #{net_forward.9} parent=1 // pred_fallthru
      _
    // Predicated region
    $region10: #{net_forward.9} parent=1 // pred_check
      _
    $region11: #{net_forward.9} parent=1 // pred_check_branch
      %18 = sbr.rel (0) target = $region13
    $region12: #{net_forward.9} parent=1 // pred_region
      _
    $region13: #{net_forward.9} parent=1 // pred_fallthru
      _
    %v19 = vld [vmem:[%s0] sm:$0x1]
    %v20 = vld [vmem:[%s1] sm:$0xff]
    %v21 = vld [vmem:[%s1 + $0x8] sm:$0xff]
    %v22 = vld [vmem:[%s1 + $0x10] sm:$0xff]
    %v23 = vld [vmem:[%s1 + $0x18] sm:$0xff]
    %v24 = vld [vmem:[%s1 + $0x20] sm:$0xff]
    %v25 = vld [vmem:[%s1 + $0x28] sm:$0xff]
    %v26 = vld [vmem:[%s1 + $0x30] sm:$0xff]
    %v27 = vld [vmem:[%s1 + $0x38] sm:$0xff]
    %v28 = vld [vmem:[%s1 + $0x40] sm:$0xff]
    %v29 = vld [vmem:[%s1 + $0x48] sm:$0xff]
    %v30 = vld [vmem:[%s1 + $0x50] sm:$0xff]
    %v31 = vld [vmem:[%s1 + $0x58] sm:$0xff]
    %v32 = vld [vmem:[%s1 + $0x60] sm:$0xff]
    %v33 = vld [vmem:[%s1 + $0x68] sm:$0xff]
    %v34 = vld [vmem:[%s1 + $0x70] sm:$0xff]
    %v35 = vld [vmem:[%s1 + $0x78] sm:$0xff]
    %36 = vmatpush.msra.mxu0 %v35
    %37 = vmatpush.msra.mxu0 %v34
    %38 = vmatpush.msra.mxu0 %v33
    %39 = vmatpush.msra.mxu0 %v32
    %40 = vmatpush.msra.mxu0 %v31
    %41 = vmatpush.msra.mxu0 %v30
    %42 = vmatpush.msra.mxu0 %v29
    %43 = vmatpush.msra.mxu0 %v28
    %44 = vmatpush.msra.mxu0 %v27
    %45 = vmatpush.msra.mxu0 %v26
    %46 = vmatpush.msra.mxu0 %v25
    %47 = vmatpush.msra.mxu0 %v24
    %48 = vmatpush.msra.mxu0 %v23
    %49 = vmatpush.msra.mxu0 %v22
    %50 = vmatpush.msra.mxu0 %v21
    %51 = vmatpush.msra.mxu0 %v20
    %52 = vmatmul.f32.gmra.mxu0 %v19
    %v53 = vpop.f32.mrf.mxu0
    %v54 = vadd.f32 0.0, %v53
    %55 = vdwg.mxu0
    %v56 = vld [vmem:[#allocation2] sm:$0x1]
    %58 = vset.pattern.permute.xlu0 0
    %59 = vperm.xlu0 %58, %v56
    %v60 = vpop.permute.xlu0 %59
    %v62 = vperm.slane %v60, 0
    %v63 = vadd.f32 %v54, %v62
    %v64 = vmax.f32 %v63, 0.0
    %65 = vst [vmem:[%s3] sm:$0x1] %v64
    %p66 = scmp.eq.s32.totalorder 0, 0
    // Predicated region
    $region14: #{net_forward.9} parent=1 // pred_check
      %p67 = pneg %p66
    $region15: #{net_forward.9} parent=1 // pred_check_branch
      %69 = sbr.rel (%p67) target = $region17
    $region16: #{net_forward.9} parent=1 // pred_region
      %vm70 = vcmask 0
      %71 = vst.msk [vmem:[#allocation3] sm:$0x1] %vm70, 0.0
    $region17: #{net_forward.9} parent=1 // pred_fallthru
      _
    %v72 = vld [vmem:[#allocation3] sm:$0x1]
    %vm73 = vcmask 1040384
    %v74 = vsel %vm73, %v54, 0.0
    %75 = vadd.xlane.f32.xlu0 %v74
    %v76 = vpop.xlane.xlu0 %75
    %v77 = vmul.f32 %v76, 0.125
    %v78 = vadd.f32 %v72, %v77
    %vm79 = vcmask 0
    %80 = vst.msk [vmem:[#allocation3] sm:$0x1] %vm79, %v78
    // Predicated region
    $region18: #{net_forward.9} parent=1 // pred_check
      _
    $region19: #{net_forward.9} parent=1 // pred_check_branch
      %82 = sbr.rel (0) target = $region21
    $region20: #{net_forward.9} parent=1 // pred_region
      _
    $region21: #{net_forward.9} parent=1 // pred_fallthru
      _
    // Predicated region
    $region22: #{net_forward.9} parent=1 // pred_check
      _
    $region23: #{net_forward.9} parent=1 // pred_check_branch
      %84 = sbr.rel (0) target = $region25
    $region24: #{net_forward.9} parent=1 // pred_region
      %86 = vsyncadd [#allocation4], 0
      %s88 = sshll.u32 [#allocation3], 4
      %s89 = int_to_ptr.vmem [resolvable:$true] %s88
      %s90 = sshll.u32 %s4, 4
      %s91 = int_to_ptr.hbm [resolvable:$true] %s90
      %93 = dma.vmem_to_hbm [thread:$0]  %s89, 16, %s91, [#allocation4]
    $region25: #{net_forward.9} parent=1 // pred_fallthru
      _
    // Predicated region
    $region26: #{net_forward.9} parent=1 // pred_check
      _
    $region27: #{net_forward.9} parent=1 // pred_check_branch
      %95 = sbr.rel (0) target = $region29
    $region28: #{net_forward.9} parent=1 // pred_region
      _
    $region29: #{net_forward.9} parent=1 // pred_fallthru
      _
    // Predicated region
    $region30: #{net_forward.9} parent=1 // pred_check
      _
    $region31: #{net_forward.9} parent=1 // pred_check_branch
      %97 = sbr.rel (0) target = $region33
    $region32: #{net_forward.9} parent=1 // pred_region
      %99 = dma.done [#allocation4], 16
    $region33: #{net_forward.9} parent=1 // pred_fallthru
      _
    %100 = vsyncpa [#allocation4], 1

// kernel: net_forward.5
$region0: #{net_forward.5}
  #allocation0 [shape = 'u32[]', space=smem, size = 0x4, offset = 0x4, fixed_abs, tag = 'smem constant byte address 0x4 - core index']
  #allocation1 [shape = 'u32[72,128]{1,0:T(1,128)}', space=vmem, size = 0x9000, scoped, tag = 'internal scratch']
  #allocation2 [shape = 'f32[128,128]{1,0:T(8,128)}', space=vmem, size = 0x10000, scoped, tag = 'scratch operand']
  %s0 = inlined_call_operand.vmem [shape: f32[128,128], index: 0, kind: input, shape index: {}]
  %s1 = inlined_call_operand.vmem [shape: f32[128,128], index: 1, kind: input, shape index: {}]
  %s2 = inlined_call_operand.vmem [shape: f32[1,128], index: 2, kind: input, shape index: {}]
  %s3 = inlined_call_operand.vmem [shape: f32[128,128], index: 3, kind: output, shape index: {}]
  %s4 = sld [smem:[#allocation0]]
  $region30: #{net_forward.5} parent=0
    _
  %s6 = ssub.s32 1, %s4
  %s7 = scalar_select 0, %s6, %s4
  // Predicated region
  $region2: #{net_forward.5} parent=0 // pred_check
    _
  $region3: #{net_forward.5} parent=0 // pred_check_branch
    %9 = sbr.rel (0) target = $region5
  $region4: #{net_forward.5} parent=0 // pred_region
    _
  $region5: #{net_forward.5} parent=0 // pred_fallthru
    _
  // Predicated region
  $region6: #{net_forward.5} parent=0 // pred_check
    _
  $region7: #{net_forward.5} parent=0 // pred_check_branch
    %11 = sbr.rel (0) target = $region9
  $region8: #{net_forward.5} parent=0 // pred_region
    _
  $region9: #{net_forward.5} parent=0 // pred_fallthru
    _
  // Predicated region
  $region10: #{net_forward.5} parent=0 // pred_check
    _
  $region11: #{net_forward.5} parent=0 // pred_check_branch
    %13 = sbr.rel (0) target = $region13
  $region12: #{net_forward.5} parent=0 // pred_region
    _
  $region13: #{net_forward.5} parent=0 // pred_fallthru
    _
  %p14 = scmp.eq.s32.totalorder 0, 0
  // Predicated region
  $region14: #{net_forward.5} parent=0 // pred_check
    %p15 = pneg %p14
  $region15: #{net_forward.5} parent=0 // pred_check_branch
    %17 = sbr.rel (%p15) target = $region17
  $region16: #{net_forward.5} parent=0 // pred_region
    %18 = vst [vmem:[#allocation2] sm:$0xff] 0.0
    %19 = vst [vmem:[#allocation2 + $0x8] sm:$0xff] 0.0
    %20 = vst [vmem:[#allocation2 + $0x10] sm:$0xff] 0.0
    %21 = vst [vmem:[#allocation2 + $0x18] sm:$0xff] 0.0
    %22 = vst [vmem:[#allocation2 + $0x20] sm:$0xff] 0.0
    %23 = vst [vmem:[#allocation2 + $0x28] sm:$0xff] 0.0
    %24 = vst [vmem:[#allocation2 + $0x30] sm:$0xff] 0.0
    %25 = vst [vmem:[#allocation2 + $0x38] sm:$0xff] 0.0
    %26 = vst [vmem:[#allocation2 + $0x40] sm:$0xff] 0.0
    %27 = vst [vmem:[#allocation2 + $0x48] sm:$0xff] 0.0
    %28 = vst [vmem:[#allocation2 + $0x50] sm:$0xff] 0.0
    %29 = vst [vmem:[#allocation2 + $0x58] sm:$0xff] 0.0
    %30 = vst [vmem:[#allocation2 + $0x60] sm:$0xff] 0.0
    %31 = vst [vmem:[#allocation2 + $0x68] sm:$0xff] 0.0
    %32 = vst [vmem:[#allocation2 + $0x70] sm:$0xff] 0.0
    %33 = vst [vmem:[#allocation2 + $0x78] sm:$0xff] 0.0
  $region17: #{net_forward.5} parent=0 // pred_fallthru
    _
  %v34 = vld [vmem:[#allocation2] sm:$0xff]
  %v35 = vld [vmem:[#allocation2 + $0x8] sm:$0xff]
  %v36 = vld [vmem:[#allocation2 + $0x10] sm:$0xff]
  %v37 = vld [vmem:[#allocation2 + $0x18] sm:$0xff]
  %v38 = vld [vmem:[#allocation2 + $0x20] sm:$0xff]
  %v39 = vld [vmem:[#allocation2 + $0x28] sm:$0xff]
  %v40 = vld [vmem:[#allocation2 + $0x30] sm:$0xff]
  %v41 = vld [vmem:[#allocation2 + $0x38] sm:$0xff]
  %v42 = vld [vmem:[#allocation2 + $0x40] sm:$0xff]
  %v43 = vld [vmem:[#allocation2 + $0x48] sm:$0xff]
  %v44 = vld [vmem:[#allocation2 + $0x50] sm:$0xff]
  %v45 = vld [vmem:[#allocation2 + $0x58] sm:$0xff]
  %v46 = vld [vmem:[#allocation2 + $0x60] sm:$0xff]
  %v47 = vld [vmem:[#allocation2 + $0x68] sm:$0xff]
  %v48 = vld [vmem:[#allocation2 + $0x70] sm:$0xff]
  %v49 = vld [vmem:[#allocation2 + $0x78] sm:$0xff]
  %v50 = vld [vmem:[%s0] sm:$0xff]
  %v51 = vld [vmem:[%s0 + $0x8] sm:$0xff]
  %v52 = vld [vmem:[%s0 + $0x10] sm:$0xff]
  %v53 = vld [vmem:[%s0 + $0x18] sm:$0xff]
  %v54 = vld [vmem:[%s0 + $0x20] sm:$0xff]
  %v55 = vld [vmem:[%s0 + $0x28] sm:$0xff]
  %v56 = vld [vmem:[%s0 + $0x30] sm:$0xff]
  %v57 = vld [vmem:[%s0 + $0x38] sm:$0xff]
  %v58 = vld [vmem:[%s0 + $0x40] sm:$0xff]
  %v59 = vld [vmem:[%s0 + $0x48] sm:$0xff]
  %v60 = vld [vmem:[%s0 + $0x50] sm:$0xff]
  %v61 = vld [vmem:[%s0 + $0x58] sm:$0xff]
  %v62 = vld [vmem:[%s0 + $0x60] sm:$0xff]
  %v63 = vld [vmem:[%s0 + $0x68] sm:$0xff]
  %v64 = vld [vmem:[%s0 + $0x70] sm:$0xff]
  %v65 = vld [vmem:[%s0 + $0x78] sm:$0xff]
  %v66 = vld [vmem:[%s1] sm:$0xff]
  %v67 = vld [vmem:[%s1 + $0x8] sm:$0xff]
  %v68 = vld [vmem:[%s1 + $0x10] sm:$0xff]
  %v69 = vld [vmem:[%s1 + $0x18] sm:$0xff]
  %v70 = vld [vmem:[%s1 + $0x20] sm:$0xff]
  %v71 = vld [vmem:[%s1 + $0x28] sm:$0xff]
  %v72 = vld [vmem:[%s1 + $0x30] sm:$0xff]
  %v73 = vld [vmem:[%s1 + $0x38] sm:$0xff]
  %v74 = vld [vmem:[%s1 + $0x40] sm:$0xff]
  %v75 = vld [vmem:[%s1 + $0x48] sm:$0xff]
  %v76 = vld [vmem:[%s1 + $0x50] sm:$0xff]
  %v77 = vld [vmem:[%s1 + $0x58] sm:$0xff]
  %v78 = vld [vmem:[%s1 + $0x60] sm:$0xff]
  %v79 = vld [vmem:[%s1 + $0x68] sm:$0xff]
  %v80 = vld [vmem:[%s1 + $0x70] sm:$0xff]
  %v81 = vld [vmem:[%s1 + $0x78] sm:$0xff]
  %82 = vmatpush.msra.mxu0 %v81
  %83 = vmatpush.msra.mxu0 %v80
  %84 = vmatpush.msra.mxu0 %v79
  %85 = vmatpush.msra.mxu0 %v78
  %86 = vmatpush.msra.mxu0 %v77
  %87 = vmatpush.msra.mxu0 %v76
  %88 = vmatpush.msra.mxu0 %v75
  %89 = vmatpush.msra.mxu0 %v74
  %90 = vmatpush.msra.mxu0 %v73
  %91 = vmatpush.msra.mxu0 %v72
  %92 = vmatpush.msra.mxu0 %v71
  %93 = vmatpush.msra.mxu0 %v70
  %94 = vmatpush.msra.mxu0 %v69
  %95 = vmatpush.msra.mxu0 %v68
  %96 = vmatpush.msra.mxu0 %v67
  %97 = vmatpush.msra.mxu0 %v66
  %98 = vmatmul.f32.gmra.mxu0 %v50
  %v99 = vpop.f32.mrf.mxu0
  %v100 = vadd.f32 0.0, %v99
  %101 = vmatmul.f32.gmra.mxu0 %v51
  %v102 = vpop.f32.mrf.mxu0
  %v103 = vadd.f32 0.0, %v102
  %104 = vmatmul.f32.gmra.mxu0 %v52
  %v105 = vpop.f32.mrf.mxu0
  %v106 = vadd.f32 0.0, %v105
  %107 = vmatmul.f32.gmra.mxu0 %v53
  %v108 = vpop.f32.mrf.mxu0
  %v109 = vadd.f32 0.0, %v108
  %110 = vmatmul.f32.gmra.mxu0 %v54
  %v111 = vpop.f32.mrf.mxu0
  %v112 = vadd.f32 0.0, %v111
  %113 = vmatmul.f32.gmra.mxu0 %v55
  %v114 = vpop.f32.mrf.mxu0
  %v115 = vadd.f32 0.0, %v114
  %116 = vmatmul.f32.gmra.mxu0 %v56
  %v117 = vpop.f32.mrf.mxu0
  %v118 = vadd.f32 0.0, %v117
  %119 = vmatmul.f32.gmra.mxu0 %v57
  %v120 = vpop.f32.mrf.mxu0
  %v121 = vadd.f32 0.0, %v120
  %122 = vmatmul.f32.gmra.mxu0 %v58
  %v123 = vpop.f32.mrf.mxu0
  %v124 = vadd.f32 0.0, %v123
  %125 = vmatmul.f32.gmra.mxu0 %v59
  %v126 = vpop.f32.mrf.mxu0
  %v127 = vadd.f32 0.0, %v126
  %128 = vmatmul.f32.gmra.mxu0 %v60
  %v129 = vpop.f32.mrf.mxu0
  %v130 = vadd.f32 0.0, %v129
  %131 = vmatmul.f32.gmra.mxu0 %v61
  %v132 = vpop.f32.mrf.mxu0
  %v133 = vadd.f32 0.0, %v132
  %134 = vmatmul.f32.gmra.mxu0 %v62
  %v135 = vpop.f32.mrf.mxu0
  %v136 = vadd.f32 0.0, %v135
  %137 = vmatmul.f32.gmra.mxu0 %v63
  %v138 = vpop.f32.mrf.mxu0
  %v139 = vadd.f32 0.0, %v138
  %140 = vmatmul.f32.gmra.mxu0 %v64
  %v141 = vpop.f32.mrf.mxu0
  %v142 = vadd.f32 0.0, %v141
  %143 = vmatmul.f32.gmra.mxu0 %v65
  %v144 = vpop.f32.mrf.mxu0
  %v145 = vadd.f32 0.0, %v144
  %146 = vdwg.mxu0
  %v147 = vadd.f32 %v34, %v100
  %v148 = vadd.f32 %v35, %v103
  %v149 = vadd.f32 %v36, %v106
  %v150 = vadd.f32 %v37, %v109
  %v151 = vadd.f32 %v38, %v112
  %v152 = vadd.f32 %v39, %v115
  %v153 = vadd.f32 %v40, %v118
  %v154 = vadd.f32 %v41, %v121
  %v155 = vadd.f32 %v42, %v124
  %v156 = vadd.f32 %v43, %v127
  %v157 = vadd.f32 %v44, %v130
  %v158 = vadd.f32 %v45, %v133
  %v159 = vadd.f32 %v46, %v136
  %v160 = vadd.f32 %v47, %v139
  %v161 = vadd.f32 %v48, %v142
  %v162 = vadd.f32 %v49, %v145
  %163 = vst [vmem:[#allocation2] sm:$0xff] %v147
  %164 = vst [vmem:[#allocation2 + $0x8] sm:$0xff] %v148
  %165 = vst [vmem:[#allocation2 + $0x10] sm:$0xff] %v149
  %166 = vst [vmem:[#allocation2 + $0x18] sm:$0xff] %v150
  %167 = vst [vmem:[#allocation2 + $0x20] sm:$0xff] %v151
  %168 = vst [vmem:[#allocation2 + $0x28] sm:$0xff] %v152
  %169 = vst [vmem:[#allocation2 + $0x30] sm:$0xff] %v153
  %170 = vst [vmem:[#allocation2 + $0x38] sm:$0xff] %v154
  %171 = vst [vmem:[#allocation2 + $0x40] sm:$0xff] %v155
  %172 = vst [vmem:[#allocation2 + $0x48] sm:$0xff] %v156
  %173 = vst [vmem:[#allocation2 + $0x50] sm:$0xff] %v157
  %174 = vst [vmem:[#allocation2 + $0x58] sm:$0xff] %v158
  %175 = vst [vmem:[#allocation2 + $0x60] sm:$0xff] %v159
  %176 = vst [vmem:[#allocation2 + $0x68] sm:$0xff] %v160
  %177 = vst [vmem:[#allocation2 + $0x70] sm:$0xff] %v161
  %178 = vst [vmem:[#allocation2 + $0x78] sm:$0xff] %v162
  // Predicated region
  $region18: #{net_forward.5} parent=0 // pred_check
    %p179 = pneg %p14
  $region19: #{net_forward.5} parent=0 // pred_check_branch
    %181 = sbr.rel (%p179) target = $region21
  $region20: #{net_forward.5} parent=0 // pred_region
    %v182 = vld [vmem:[#allocation2] sm:$0xff]
    %v183 = vld [vmem:[#allocation2 + $0x8] sm:$0xff]
    %v184 = vld [vmem:[#allocation2 + $0x10] sm:$0xff]
    %v185 = vld [vmem:[#allocation2 + $0x18] sm:$0xff]
    %v186 = vld [vmem:[#allocation2 + $0x20] sm:$0xff]
    %v187 = vld [vmem:[#allocation2 + $0x28] sm:$0xff]
    %v188 = vld [vmem:[#allocation2 + $0x30] sm:$0xff]
    %v189 = vld [vmem:[#allocation2 + $0x38] sm:$0xff]
    %v190 = vld [vmem:[#allocation2 + $0x40] sm:$0xff]
    %v191 = vld [vmem:[#allocation2 + $0x48] sm:$0xff]
    %v192 = vld [vmem:[#allocation2 + $0x50] sm:$0xff]
    %v193 = vld [vmem:[#allocation2 + $0x58] sm:$0xff]
    %v194 = vld [vmem:[#allocation2 + $0x60] sm:$0xff]
    %v195 = vld [vmem:[#allocation2 + $0x68] sm:$0xff]
    %v196 = vld [vmem:[#allocation2 + $0x70] sm:$0xff]
    %v197 = vld [vmem:[#allocation2 + $0x78] sm:$0xff]
    %198 = vst [vmem:[%s3] sm:$0xff] %v182
    %199 = vst [vmem:[%s3 + $0x8] sm:$0xff] %v183
    %200 = vst [vmem:[%s3 + $0x10] sm:$0xff] %v184
    %201 = vst [vmem:[%s3 + $0x18] sm:$0xff] %v185
    %202 = vst [vmem:[%s3 + $0x20] sm:$0xff] %v186
    %203 = vst [vmem:[%s3 + $0x28] sm:$0xff] %v187
    %204 = vst [vmem:[%s3 + $0x30] sm:$0xff] %v188
    %205 = vst [vmem:[%s3 + $0x38] sm:$0xff] %v189
    %206 = vst [vmem:[%s3 + $0x40] sm:$0xff] %v190
    %207 = vst [vmem:[%s3 + $0x48] sm:$0xff] %v191
    %208 = vst [vmem:[%s3 + $0x50] sm:$0xff] %v192
    %209 = vst [vmem:[%s3 + $0x58] sm:$0xff] %v193
    %210 = vst [vmem:[%s3 + $0x60] sm:$0xff] %v194
    %211 = vst [vmem:[%s3 + $0x68] sm:$0xff] %v195
    %212 = vst [vmem:[%s3 + $0x70] sm:$0xff] %v196
    %213 = vst [vmem:[%s3 + $0x78] sm:$0xff] %v197
  $region21: #{net_forward.5} parent=0 // pred_fallthru
    _
  // Predicated region
  $region22: #{net_forward.5} parent=0 // pred_check
    _
  $region23: #{net_forward.5} parent=0 // pred_check_branch
    %215 = sbr.rel (0) target = $region25
  $region24: #{net_forward.5} parent=0 // pred_region
    _
  $region25: #{net_forward.5} parent=0 // pred_fallthru
    _
  // Predicated region
  $region26: #{net_forward.5} parent=0 // pred_check
    _
  $region27: #{net_forward.5} parent=0 // pred_check_branch
    %217 = sbr.rel (0) target = $region29
  $region28: #{net_forward.5} parent=0 // pred_region
    _
  $region29: #{net_forward.5} parent=0 // pred_fallthru
    _

// kernel: net_forward.8
$region0: #{net_forward.8}
  #allocation0 [shape = 'u32[]', space=smem, size = 0x4, offset = 0x4, fixed_abs, tag = 'smem constant byte address 0x4 - core index']
  #allocation1 [shape = 'u32[72,128]{1,0:T(1,128)}', space=vmem, size = 0x9000, scoped, tag = 'internal scratch']
  #allocation2 [shape = 'f32[128,128]{1,0:T(8,128)}', space=vmem, size = 0x10000, scoped, tag = 'scratch operand']
  %s0 = inlined_call_operand.vmem [shape: f32[128,128], index: 0, kind: input, shape index: {}]
  %s1 = inlined_call_operand.vmem [shape: f32[128,128], index: 1, kind: input, shape index: {}]
  %s2 = inlined_call_operand.vmem [shape: f32[1,128], index: 2, kind: input, shape index: {}]
  %s3 = inlined_call_operand.vmem [shape: f32[128,128], index: 3, kind: output, shape index: {}]
  %s4 = sld [smem:[#allocation0]]
  $region30: #{net_forward.8} parent=0
    _
  %s6 = ssub.s32 1, %s4
  %s7 = scalar_select 0, %s6, %s4
  // Predicated region
  $region2: #{net_forward.8} parent=0 // pred_check
    _
  $region3: #{net_forward.8} parent=0 // pred_check_branch
    %9 = sbr.rel (0) target = $region5
  $region4: #{net_forward.8} parent=0 // pred_region
    _
  $region5: #{net_forward.8} parent=0 // pred_fallthru
    _
  // Predicated region
  $region6: #{net_forward.8} parent=0 // pred_check
    _
  $region7: #{net_forward.8} parent=0 // pred_check_branch
    %11 = sbr.rel (0) target = $region9
  $region8: #{net_forward.8} parent=0 // pred_region
    _
  $region9: #{net_forward.8} parent=0 // pred_fallthru
    _
  // Predicated region
  $region10: #{net_forward.8} parent=0 // pred_check
    _
  $region11: #{net_forward.8} parent=0 // pred_check_branch
    %13 = sbr.rel (0) target = $region13
  $region12: #{net_forward.8} parent=0 // pred_region
    _
  $region13: #{net_forward.8} parent=0 // pred_fallthru
    _
  %p14 = scmp.eq.s32.totalorder 0, 0
  // Predicated region
  $region14: #{net_forward.8} parent=0 // pred_check
    %p15 = pneg %p14
  $region15: #{net_forward.8} parent=0 // pred_check_branch
    %17 = sbr.rel (%p15) target = $region17
  $region16: #{net_forward.8} parent=0 // pred_region
    %18 = vst [vmem:[#allocation2] sm:$0xff] 0.0
    %19 = vst [vmem:[#allocation2 + $0x8] sm:$0xff] 0.0
    %20 = vst [vmem:[#allocation2 + $0x10] sm:$0xff] 0.0
    %21 = vst [vmem:[#allocation2 + $0x18] sm:$0xff] 0.0
    %22 = vst [vmem:[#allocation2 + $0x20] sm:$0xff] 0.0
    %23 = vst [vmem:[#allocation2 + $0x28] sm:$0xff] 0.0
    %24 = vst [vmem:[#allocation2 + $0x30] sm:$0xff] 0.0
    %25 = vst [vmem:[#allocation2 + $0x38] sm:$0xff] 0.0
    %26 = vst [vmem:[#allocation2 + $0x40] sm:$0xff] 0.0
    %27 = vst [vmem:[#allocation2 + $0x48] sm:$0xff] 0.0
    %28 = vst [vmem:[#allocation2 + $0x50] sm:$0xff] 0.0
    %29 = vst [vmem:[#allocation2 + $0x58] sm:$0xff] 0.0
    %30 = vst [vmem:[#allocation2 + $0x60] sm:$0xff] 0.0
    %31 = vst [vmem:[#allocation2 + $0x68] sm:$0xff] 0.0
    %32 = vst [vmem:[#allocation2 + $0x70] sm:$0xff] 0.0
    %33 = vst [vmem:[#allocation2 + $0x78] sm:$0xff] 0.0
  $region17: #{net_forward.8} parent=0 // pred_fallthru
    _
  %v34 = vld [vmem:[#allocation2] sm:$0xff]
  %v35 = vld [vmem:[#allocation2 + $0x8] sm:$0xff]
  %v36 = vld [vmem:[#allocation2 + $0x10] sm:$0xff]
  %v37 = vld [vmem:[#allocation2 + $0x18] sm:$0xff]
  %v38 = vld [vmem:[#allocation2 + $0x20] sm:$0xff]
  %v39 = vld [vmem:[#allocation2 + $0x28] sm:$0xff]
  %v40 = vld [vmem:[#allocation2 + $0x30] sm:$0xff]
  %v41 = vld [vmem:[#allocation2 + $0x38] sm:$0xff]
  %v42 = vld [vmem:[#allocation2 + $0x40] sm:$0xff]
  %v43 = vld [vmem:[#allocation2 + $0x48] sm:$0xff]
  %v44 = vld [vmem:[#allocation2 + $0x50] sm:$0xff]
  %v45 = vld [vmem:[#allocation2 + $0x58] sm:$0xff]
  %v46 = vld [vmem:[#allocation2 + $0x60] sm:$0xff]
  %v47 = vld [vmem:[#allocation2 + $0x68] sm:$0xff]
  %v48 = vld [vmem:[#allocation2 + $0x70] sm:$0xff]
  %v49 = vld [vmem:[#allocation2 + $0x78] sm:$0xff]
  %v50 = vld [vmem:[%s0] sm:$0xff]
  %v51 = vld [vmem:[%s0 + $0x8] sm:$0xff]
  %v52 = vld [vmem:[%s0 + $0x10] sm:$0xff]
  %v53 = vld [vmem:[%s0 + $0x18] sm:$0xff]
  %v54 = vld [vmem:[%s0 + $0x20] sm:$0xff]
  %v55 = vld [vmem:[%s0 + $0x28] sm:$0xff]
  %v56 = vld [vmem:[%s0 + $0x30] sm:$0xff]
  %v57 = vld [vmem:[%s0 + $0x38] sm:$0xff]
  %v58 = vld [vmem:[%s0 + $0x40] sm:$0xff]
  %v59 = vld [vmem:[%s0 + $0x48] sm:$0xff]
  %v60 = vld [vmem:[%s0 + $0x50] sm:$0xff]
  %v61 = vld [vmem:[%s0 + $0x58] sm:$0xff]
  %v62 = vld [vmem:[%s0 + $0x60] sm:$0xff]
  %v63 = vld [vmem:[%s0 + $0x68] sm:$0xff]
  %v64 = vld [vmem:[%s0 + $0x70] sm:$0xff]
  %v65 = vld [vmem:[%s0 + $0x78] sm:$0xff]
  %v66 = vld [vmem:[%s1] sm:$0xff]
  %v67 = vld [vmem:[%s1 + $0x8] sm:$0xff]
  %v68 = vld [vmem:[%s1 + $0x10] sm:$0xff]
  %v69 = vld [vmem:[%s1 + $0x18] sm:$0xff]
  %v70 = vld [vmem:[%s1 + $0x20] sm:$0xff]
  %v71 = vld [vmem:[%s1 + $0x28] sm:$0xff]
  %v72 = vld [vmem:[%s1 + $0x30] sm:$0xff]
  %v73 = vld [vmem:[%s1 + $0x38] sm:$0xff]
  %v74 = vld [vmem:[%s1 + $0x40] sm:$0xff]
  %v75 = vld [vmem:[%s1 + $0x48] sm:$0xff]
  %v76 = vld [vmem:[%s1 + $0x50] sm:$0xff]
  %v77 = vld [vmem:[%s1 + $0x58] sm:$0xff]
  %v78 = vld [vmem:[%s1 + $0x60] sm:$0xff]
  %v79 = vld [vmem:[%s1 + $0x68] sm:$0xff]
  %v80 = vld [vmem:[%s1 + $0x70] sm:$0xff]
  %v81 = vld [vmem:[%s1 + $0x78] sm:$0xff]
  %82 = vmatpush.msra.mxu0 %v81
  %83 = vmatpush.msra.mxu0 %v80
  %84 = vmatpush.msra.mxu0 %v79
  %85 = vmatpush.msra.mxu0 %v78
  %86 = vmatpush.msra.mxu0 %v77
  %87 = vmatpush.msra.mxu0 %v76
  %88 = vmatpush.msra.mxu0 %v75
  %89 = vmatpush.msra.mxu0 %v74
  %90 = vmatpush.msra.mxu0 %v73
  %91 = vmatpush.msra.mxu0 %v72
  %92 = vmatpush.msra.mxu0 %v71
  %93 = vmatpush.msra.mxu0 %v70
  %94 = vmatpush.msra.mxu0 %v69
  %95 = vmatpush.msra.mxu0 %v68
  %96 = vmatpush.msra.mxu0 %v67
  %97 = vmatpush.msra.mxu0 %v66
  %98 = vmatmul.f32.gmra.mxu0 %v50
  %v99 = vpop.f32.mrf.mxu0
  %v100 = vadd.f32 0.0, %v99
  %101 = vmatmul.f32.gmra.mxu0 %v51
  %v102 = vpop.f32.mrf.mxu0
  %v103 = vadd.f32 0.0, %v102
  %104 = vmatmul.f32.gmra.mxu0 %v52
  %v105 = vpop.f32.mrf.mxu0
  %v106 = vadd.f32 0.0, %v105
  %107 = vmatmul.f32.gmra.mxu0 %v53
  %v108 = vpop.f32.mrf.mxu0
  %v109 = vadd.f32 0.0, %v108
  %110 = vmatmul.f32.gmra.mxu0 %v54
  %v111 = vpop.f32.mrf.mxu0
  %v112 = vadd.f32 0.0, %v111
  %113 = vmatmul.f32.gmra.mxu0 %v55
  %v114 = vpop.f32.mrf.mxu0
  %v115 = vadd.f32 0.0, %v114
  %116 = vmatmul.f32.gmra.mxu0 %v56
  %v117 = vpop.f32.mrf.mxu0
  %v118 = vadd.f32 0.0, %v117
  %119 = vmatmul.f32.gmra.mxu0 %v57
  %v120 = vpop.f32.mrf.mxu0
  %v121 = vadd.f32 0.0, %v120
  %122 = vmatmul.f32.gmra.mxu0 %v58
  %v123 = vpop.f32.mrf.mxu0
  %v124 = vadd.f32 0.0, %v123
  %125 = vmatmul.f32.gmra.mxu0 %v59
  %v126 = vpop.f32.mrf.mxu0
  %v127 = vadd.f32 0.0, %v126
  %128 = vmatmul.f32.gmra.mxu0 %v60
  %v129 = vpop.f32.mrf.mxu0
  %v130 = vadd.f32 0.0, %v129
  %131 = vmatmul.f32.gmra.mxu0 %v61
  %v132 = vpop.f32.mrf.mxu0
  %v133 = vadd.f32 0.0, %v132
  %134 = vmatmul.f32.gmra.mxu0 %v62
  %v135 = vpop.f32.mrf.mxu0
  %v136 = vadd.f32 0.0, %v135
  %137 = vmatmul.f32.gmra.mxu0 %v63
  %v138 = vpop.f32.mrf.mxu0
  %v139 = vadd.f32 0.0, %v138
  %140 = vmatmul.f32.gmra.mxu0 %v64
  %v141 = vpop.f32.mrf.mxu0
  %v142 = vadd.f32 0.0, %v141
  %143 = vmatmul.f32.gmra.mxu0 %v65
  %v144 = vpop.f32.mrf.mxu0
  %v145 = vadd.f32 0.0, %v144
  %146 = vdwg.mxu0
  %v147 = vadd.f32 %v34, %v100
  %v148 = vadd.f32 %v35, %v103
  %v149 = vadd.f32 %v36, %v106
  %v150 = vadd.f32 %v37, %v109
  %v151 = vadd.f32 %v38, %v112
  %v152 = vadd.f32 %v39, %v115
  %v153 = vadd.f32 %v40, %v118
  %v154 = vadd.f32 %v41, %v121
  %v155 = vadd.f32 %v42, %v124
  %v156 = vadd.f32 %v43, %v127
  %v157 = vadd.f32 %v44, %v130
  %v158 = vadd.f32 %v45, %v133
  %v159 = vadd.f32 %v46, %v136
  %v160 = vadd.f32 %v47, %v139
  %v161 = vadd.f32 %v48, %v142
  %v162 = vadd.f32 %v49, %v145
  %163 = vst [vmem:[#allocation2] sm:$0xff] %v147
  %164 = vst [vmem:[#allocation2 + $0x8] sm:$0xff] %v148
  %165 = vst [vmem:[#allocation2 + $0x10] sm:$0xff] %v149
  %166 = vst [vmem:[#allocation2 + $0x18] sm:$0xff] %v150
  %167 = vst [vmem:[#allocation2 + $0x20] sm:$0xff] %v151
  %168 = vst [vmem:[#allocation2 + $0x28] sm:$0xff] %v152
  %169 = vst [vmem:[#allocation2 + $0x30] sm:$0xff] %v153
  %170 = vst [vmem:[#allocation2 + $0x38] sm:$0xff] %v154
  %171 = vst [vmem:[#allocation2 + $0x40] sm:$0xff] %v155
  %172 = vst [vmem:[#allocation2 + $0x48] sm:$0xff] %v156
  %173 = vst [vmem:[#allocation2 + $0x50] sm:$0xff] %v157
  %174 = vst [vmem:[#allocation2 + $0x58] sm:$0xff] %v158
  %175 = vst [vmem:[#allocation2 + $0x60] sm:$0xff] %v159
  %176 = vst [vmem:[#allocation2 + $0x68] sm:$0xff] %v160
  %177 = vst [vmem:[#allocation2 + $0x70] sm:$0xff] %v161
  %178 = vst [vmem:[#allocation2 + $0x78] sm:$0xff] %v162
  // Predicated region
  $region18: #{net_forward.8} parent=0 // pred_check
    %p179 = pneg %p14
  $region19: #{net_forward.8} parent=0 // pred_check_branch
    %181 = sbr.rel (%p179) target = $region21
  $region20: #{net_forward.8} parent=0 // pred_region
    %v182 = vld [vmem:[#allocation2] sm:$0xff]
    %v183 = vld [vmem:[#allocation2 + $0x8] sm:$0xff]
    %v184 = vld [vmem:[#allocation2 + $0x10] sm:$0xff]
    %v185 = vld [vmem:[#allocation2 + $0x18] sm:$0xff]
    %v186 = vld [vmem:[#allocation2 + $0x20] sm:$0xff]
    %v187 = vld [vmem:[#allocation2 + $0x28] sm:$0xff]
    %v188 = vld [vmem:[#allocation2 + $0x30] sm:$0xff]
    %v189 = vld [vmem:[#allocation2 + $0x38] sm:$0xff]
    %v190 = vld [vmem:[#allocation2 + $0x40] sm:$0xff]
    %v191 = vld [vmem:[#allocation2 + $0x48] sm:$0xff]
    %v192 = vld [vmem:[#allocation2 + $0x50] sm:$0xff]
    %v193 = vld [vmem:[#allocation2 + $0x58] sm:$0xff]
    %v194 = vld [vmem:[#allocation2 + $0x60] sm:$0xff]
    %v195 = vld [vmem:[#allocation2 + $0x68] sm:$0xff]
    %v196 = vld [vmem:[#allocation2 + $0x70] sm:$0xff]
    %v197 = vld [vmem:[#allocation2 + $0x78] sm:$0xff]
    %v198 = vld [vmem:[%s2] sm:$0x1]
    %v200 = vperm.slane %v198, 0
    %v202 = vadd.f32 %v182, %v200
    %v203 = vadd.f32 %v183, %v200
    %v204 = vadd.f32 %v184, %v200
    %v205 = vadd.f32 %v185, %v200
    %v206 = vadd.f32 %v186, %v200
    %v207 = vadd.f32 %v187, %v200
    %v208 = vadd.f32 %v188, %v200
    %v209 = vadd.f32 %v189, %v200
    %v210 = vadd.f32 %v190, %v200
    %v211 = vadd.f32 %v191, %v200
    %v212 = vadd.f32 %v192, %v200
    %v213 = vadd.f32 %v193, %v200
    %v214 = vadd.f32 %v194, %v200
    %v215 = vadd.f32 %v195, %v200
    %v216 = vadd.f32 %v196, %v200
    %v217 = vadd.f32 %v197, %v200
    %218 = vst [vmem:[%s3] sm:$0xff] %v202
    %219 = vst [vmem:[%s3 + $0x8] sm:$0xff] %v203
    %220 = vst [vmem:[%s3 + $0x10] sm:$0xff] %v204
    %221 = vst [vmem:[%s3 + $0x18] sm:$0xff] %v205
    %222 = vst [vmem:[%s3 + $0x20] sm:$0xff] %v206
    %223 = vst [vmem:[%s3 + $0x28] sm:$0xff] %v207
    %224 = vst [vmem:[%s3 + $0x30] sm:$0xff] %v208
    %225 = vst [vmem:[%s3 + $0x38] sm:$0xff] %v209
    %226 = vst [vmem:[%s3 + $0x40] sm:$0xff] %v210
    %227 = vst [vmem:[%s3 + $0x48] sm:$0xff] %v211
    %228 = vst [vmem:[%s3 + $0x50] sm:$0xff] %v212
    %229 = vst [vmem:[%s3 + $0x58] sm:$0xff] %v213
    %230 = vst [vmem:[%s3 + $0x60] sm:$0xff] %v214
    %231 = vst [vmem:[%s3 + $0x68] sm:$0xff] %v215
    %232 = vst [vmem:[%s3 + $0x70] sm:$0xff] %v216
    %233 = vst [vmem:[%s3 + $0x78] sm:$0xff] %v217
  $region21: #{net_forward.8} parent=0 // pred_fallthru
    _
  // Predicated region
  $region22: #{net_forward.8} parent=0 // pred_check
    _
  $region23: #{net_forward.8} parent=0 // pred_check_branch
    %235 = sbr.rel (0) target = $region25
  $region24: #{net_forward.8} parent=0 // pred_region
    _
  $region25: #{net_forward.8} parent=0 // pred_fallthru
    _
  // Predicated region
  $region26: #{net_forward.8} parent=0 // pred_check
    _
  $region27: #{net_forward.8} parent=0 // pred_check_branch
    %237 = sbr.rel (0) target = $region29
  $region28: #{net_forward.8} parent=0 // pred_region
    _
  $region29: #{net_forward.8} parent=0 // pred_fallthru
    _

</llo_original>
